<compile_context>
chip_gen: v5e
topology: v5e:2x2
jax: 0.10.0
libtpu: 0.0.40
codegen_flags: <defaults>
</compile_context>

<pallas_src>
import functools

import jax
import jax.numpy as jnp
from jax.experimental import pallas as pl
from jax.experimental.pallas import tpu as pltpu


def _lstm_fc_kernel(x_ref, w_ih_ref, w_hh_ref, b_ref, fcw_ref, fcb_ref,
                    out_ref, *, hidden_size):
    """Fused single-layer LSTM recurrence + final Linear.

    x_ref    : [B, T, I]   batch-first input (as PyTorch provides it)
    w_ih_ref : [I, 4H]     input weight, gate columns in (f, i, g, o) order
    w_hh_ref : [H, 4H]     recurrent weight, same gate order
    b_ref    : [1, 4H]     b_ih + b_hh, same gate order
    fcw_ref  : [H, O]
    fcb_ref  : [1, O]
    out_ref  : [B, O]
    """
    B, T, _ = x_ref.shape
    H = hidden_size

    # Hoisted loads / broadcasts (JAX does not CSE broadcast_in_dim).
    w_ih = w_ih_ref[...]                                   # [I, 4H]
    w_hh = w_hh_ref[...]                                   # [H, 4H]
    fcw = fcw_ref[...]                                     # [H, O]
    b_bcast = jnp.broadcast_to(b_ref[...], (B, 4 * H))     # [B, 4H]

    # Input projection for every timestep, bias folded in.  Depends only on
    # x, so all of these MXU pushes sit off the serial h/c dependence chain
    # and overlap freely with the recurrence below.
    x_gates = [
        jnp.dot(x_ref[:, t, :], w_ih, preferred_element_type=jnp.float32)
        + b_bcast
        for t in range(T)
    ]                                                      # T x [B, 4H]

    def gate_update(gates, c_prev):
        # gates is [B, 4H] = one 128-lane vreg.  Apply both nonlinearities
        # over the full vreg (EUP slot has slack), then slice.  Gate order
        # (f, i, g, o): f sits at lanes 0..H-1, so f * c_prev needs no roll.
        sig = jax.nn.sigmoid(gates)
        tnh = jnp.tanh(gates)
        f_g = sig[:, :H]
        i_g = sig[:, H:2 * H]
        g_g = tnh[:, 2 * H:3 * H]
        o_g = sig[:, 3 * H:]
        c_new = f_g * c_prev + i_g * g_g
        h_new = o_g * jnp.tanh(c_new)
        return h_new, c_new

    # Step 0: h0 = 0, so the recurrent matmul vanishes.
    h, c = gate_update(x_gates[0], jnp.zeros((B, H), jnp.float32))

    # Remaining steps: h and c stay vreg-resident loop carries; the only work
    # on the serial chain is one [B,H]x[H,4H] matmul + the gate update.
    # T is tiny & static, so a static unroll keeps every index static and
    # lets MXU / EUP / VPU work from adjacent steps co-issue.
    for t in range(1, T):
        gates = jnp.dot(h, w_hh, preferred_element_type=jnp.float32) + x_gates[t]
        h, c = gate_update(gates, c)

    # Final Linear on the last timestep's hidden state.
    out_ref[...] = (jnp.dot(h, fcw, preferred_element_type=jnp.float32)
                    + fcb_ref[...]).astype(out_ref.dtype)


def _reorder_gates(a, H):
    """Reorder the 4H gate axis from PyTorch (i, f, g, o) to (f, i, g, o)."""
    return jnp.concatenate(
        [a[..., H:2 * H], a[..., :H], a[..., 2 * H:]], axis=-1)


def prepare_params(params, *, hidden_size):
    """One-time layout plumbing (keep out of the per-call hot path)."""
    H = hidden_size
    O = params["fc_w"].shape[0]
    return {
        "w_ih_t": _reorder_gates(params["w_ih"].T, H),            # [I, 4H]
        "w_hh_t": _reorder_gates(params["w_hh"].T, H),            # [H, 4H]
        "b": _reorder_gates(
            (params["b_ih"] + params["b_hh"]).reshape(1, 4 * H), H),
        "fcw_t": params["fc_w"].T,                                # [H, O]
        "fcb": params["fc_b"].reshape(1, O),                      # [1, O]
    }


def net_forward(x, prepped, *, hidden_size):
    """x: [B, T, I] float32 (batch_first, like PyTorch). Returns [B, O]."""
    B, T, I = x.shape
    H = hidden_size
    O = prepped["fcw_t"].shape[1]

    vmem = pl.BlockSpec(memory_space=pltpu.MemorySpace.VMEM)
    kernel = functools.partial(_lstm_fc_kernel, hidden_size=H)

    return pl.pallas_call(
        kernel,
        out_shape=jax.ShapeDtypeStruct((B, O), jnp.float32),
        in_specs=[vmem] * 6,
        out_specs=vmem,
    )(x, prepped["w_ih_t"], prepped["w_hh_t"], prepped["b"],
      prepped["fcw_t"], prepped["fcb"])


def init_params(key, input_size, hidden_size, output_size):
    """Deterministic init matching PyTorch LSTM/Linear parameter shapes."""
    k = jax.random.split(key, 6)
    s = 1.0 / jnp.sqrt(hidden_size)
    return {
        "w_ih": jax.random.uniform(k[0], (4 * hidden_size, input_size),
                                   jnp.float32, -s, s),
        "w_hh": jax.random.uniform(k[1], (4 * hidden_size, hidden_size),
                                   jnp.float32, -s, s),
        "b_ih": jax.random.uniform(k[2], (4 * hidden_size,),
                                   jnp.float32, -s, s),
        "b_hh": jax.random.uniform(k[3], (4 * hidden_size,),
                                   jnp.float32, -s, s),
        "fc_w": jax.random.uniform(k[4], (output_size, hidden_size),
                                   jnp.float32, -s, s),
        "fc_b": jax.random.uniform(k[5], (output_size,),
                                   jnp.float32, -s, s),
    }


def _reference_forward(x, params, hidden_size):
    """Pure-JAX reference with PyTorch LSTM semantics (gate order i,f,g,o)."""
    w_ih, w_hh = params["w_ih"], params["w_hh"]
    b = params["b_ih"] + params["b_hh"]
    B, T, _ = x.shape
    H = hidden_size
    h = jnp.zeros((B, H), jnp.float32)
    c = jnp.zeros((B, H), jnp.float32)
    for t in range(T):
        g = x[:, t, :] @ w_ih.T + h @ w_hh.T + b
        i_g = jax.nn.sigmoid(g[:, 0 * H:1 * H])
        f_g = jax.nn.sigmoid(g[:, 1 * H:2 * H])
        g_g = jnp.tanh(g[:, 2 * H:3 * H])
        o_g = jax.nn.sigmoid(g[:, 3 * H:4 * H])
        c = f_g * c + i_g * g_g
        h = o_g * jnp.tanh(c)
    return h @ params["fc_w"].T + params["fc_b"]


if __name__ == "__main__":
    # Net(type='LSTM', input_size=4, hidden_size=32, num_layers=1, output_size=2)
    B, T, I, H, O = 2, 8, 4, 32, 2

    key = jax.random.PRNGKey(0)
    kx, kp = jax.random.split(key)
    x = jax.random.normal(kx, (B, T, I), dtype=jnp.float32)
    params = init_params(kp, I, H, O)

    prepped = prepare_params(params, hidden_size=H)   # one-time layout prep
    out = net_forward(x, prepped, hidden_size=H)
    out = jax.block_until_ready(out)

    ref = _reference_forward(x, params, H)
    assert out.shape == (B, O)
    assert jnp.allclose(out, ref, atol=1e-5, rtol=1e-5), (out, ref)

    print("KERNEL_OK")
</pallas_src>

<mosaic_0001>
module attributes {stable_mosaic.version = 11 : i64} {
  func.func @_lstm_fc_kernel(%arg0: memref<2x8x4xf32, #tpu.memory_space<vmem>>, %arg1: memref<4x128xf32, #tpu.memory_space<vmem>>, %arg2: memref<32x128xf32, #tpu.memory_space<vmem>>, %arg3: memref<1x128xf32, #tpu.memory_space<vmem>>, %arg4: memref<32x2xf32, #tpu.memory_space<vmem>>, %arg5: memref<1x2xf32, #tpu.memory_space<vmem>>, %arg6: memref<2x2xf32, #tpu.memory_space<vmem>>) attributes {dimension_semantics = [], scalar_prefetch = 0 : i64, scratch_operands = 0 : i64, tpu.core_type = #tpu.core_type<tc>} {
    %c0 = arith.constant 0 : index
    %c0_0 = arith.constant 0 : index
    %0 = vector.load %arg1[%c0, %c0_0] : memref<4x128xf32, #tpu.memory_space<vmem>>, vector<4x128xf32>
    %c0_1 = arith.constant 0 : index
    %c0_2 = arith.constant 0 : index
    %1 = vector.load %arg2[%c0_1, %c0_2] : memref<32x128xf32, #tpu.memory_space<vmem>>, vector<32x128xf32>
    %c0_3 = arith.constant 0 : index
    %c0_4 = arith.constant 0 : index
    %2 = vector.load %arg4[%c0_3, %c0_4] : memref<32x2xf32, #tpu.memory_space<vmem>>, vector<32x2xf32>
    %c0_5 = arith.constant 0 : index
    %c0_6 = arith.constant 0 : index
    %3 = vector.load %arg3[%c0_5, %c0_6] : memref<1x128xf32, #tpu.memory_space<vmem>>, vector<1x128xf32>
    %4 = vector.shape_cast %3 : vector<1x128xf32> to vector<1x128xf32>
    %5 = vector.broadcast %4 : vector<1x128xf32> to vector<2x128xf32>
    %c0_7 = arith.constant 0 : index
    %c0_8 = arith.constant 0 : index
    %c0_9 = arith.constant 0 : index
    %6 = vector.load %arg0[%c0_7, %c0_8, %c0_9] : memref<2x8x4xf32, #tpu.memory_space<vmem>>, vector<2x1x4xf32>
    %7 = vector.shape_cast %6 : vector<2x1x4xf32> to vector<2x4xf32>
    %cst = arith.constant dense<0.000000e+00> : vector<2x128xf32>
    %8 = tpu.matmul %7, %0, %cst {dimension_numbers = #tpu.dot_dimension_numbers<[1], [0], [0], [1], [0, 0, 1, 1], [], []>} : vector<2x4xf32>, vector<4x128xf32>, vector<2x128xf32> -> vector<2x128xf32>
    %9 = arith.addf %8, %5 : vector<2x128xf32>
    %c0_10 = arith.constant 0 : index
    %c1 = arith.constant 1 : index
    %c0_11 = arith.constant 0 : index
    %10 = vector.load %arg0[%c0_10, %c1, %c0_11] : memref<2x8x4xf32, #tpu.memory_space<vmem>>, vector<2x1x4xf32>
    %11 = vector.shape_cast %10 : vector<2x1x4xf32> to vector<2x4xf32>
    %cst_12 = arith.constant dense<0.000000e+00> : vector<2x128xf32>
    %12 = tpu.matmul %11, %0, %cst_12 {dimension_numbers = #tpu.dot_dimension_numbers<[1], [0], [0], [1], [0, 0, 1, 1], [], []>} : vector<2x4xf32>, vector<4x128xf32>, vector<2x128xf32> -> vector<2x128xf32>
    %13 = arith.addf %12, %5 : vector<2x128xf32>
    %c0_13 = arith.constant 0 : index
    %c2 = arith.constant 2 : index
    %c0_14 = arith.constant 0 : index
    %14 = vector.load %arg0[%c0_13, %c2, %c0_14] : memref<2x8x4xf32, #tpu.memory_space<vmem>>, vector<2x1x4xf32>
    %15 = vector.shape_cast %14 : vector<2x1x4xf32> to vector<2x4xf32>
    %cst_15 = arith.constant dense<0.000000e+00> : vector<2x128xf32>
    %16 = tpu.matmul %15, %0, %cst_15 {dimension_numbers = #tpu.dot_dimension_numbers<[1], [0], [0], [1], [0, 0, 1, 1], [], []>} : vector<2x4xf32>, vector<4x128xf32>, vector<2x128xf32> -> vector<2x128xf32>
    %17 = arith.addf %16, %5 : vector<2x128xf32>
    %c0_16 = arith.constant 0 : index
    %c3 = arith.constant 3 : index
    %c0_17 = arith.constant 0 : index
    %18 = vector.load %arg0[%c0_16, %c3, %c0_17] : memref<2x8x4xf32, #tpu.memory_space<vmem>>, vector<2x1x4xf32>
    %19 = vector.shape_cast %18 : vector<2x1x4xf32> to vector<2x4xf32>
    %cst_18 = arith.constant dense<0.000000e+00> : vector<2x128xf32>
    %20 = tpu.matmul %19, %0, %cst_18 {dimension_numbers = #tpu.dot_dimension_numbers<[1], [0], [0], [1], [0, 0, 1, 1], [], []>} : vector<2x4xf32>, vector<4x128xf32>, vector<2x128xf32> -> vector<2x128xf32>
    %21 = arith.addf %20, %5 : vector<2x128xf32>
    %c0_19 = arith.constant 0 : index
    %c4 = arith.constant 4 : index
    %c0_20 = arith.constant 0 : index
    %22 = vector.load %arg0[%c0_19, %c4, %c0_20] : memref<2x8x4xf32, #tpu.memory_space<vmem>>, vector<2x1x4xf32>
    %23 = vector.shape_cast %22 : vector<2x1x4xf32> to vector<2x4xf32>
    %cst_21 = arith.constant dense<0.000000e+00> : vector<2x128xf32>
    %24 = tpu.matmul %23, %0, %cst_21 {dimension_numbers = #tpu.dot_dimension_numbers<[1], [0], [0], [1], [0, 0, 1, 1], [], []>} : vector<2x4xf32>, vector<4x128xf32>, vector<2x128xf32> -> vector<2x128xf32>
    %25 = arith.addf %24, %5 : vector<2x128xf32>
    %c0_22 = arith.constant 0 : index
    %c5 = arith.constant 5 : index
    %c0_23 = arith.constant 0 : index
    %26 = vector.load %arg0[%c0_22, %c5, %c0_23] : memref<2x8x4xf32, #tpu.memory_space<vmem>>, vector<2x1x4xf32>
    %27 = vector.shape_cast %26 : vector<2x1x4xf32> to vector<2x4xf32>
    %cst_24 = arith.constant dense<0.000000e+00> : vector<2x128xf32>
    %28 = tpu.matmul %27, %0, %cst_24 {dimension_numbers = #tpu.dot_dimension_numbers<[1], [0], [0], [1], [0, 0, 1, 1], [], []>} : vector<2x4xf32>, vector<4x128xf32>, vector<2x128xf32> -> vector<2x128xf32>
    %29 = arith.addf %28, %5 : vector<2x128xf32>
    %c0_25 = arith.constant 0 : index
    %c6 = arith.constant 6 : index
    %c0_26 = arith.constant 0 : index
    %30 = vector.load %arg0[%c0_25, %c6, %c0_26] : memref<2x8x4xf32, #tpu.memory_space<vmem>>, vector<2x1x4xf32>
    %31 = vector.shape_cast %30 : vector<2x1x4xf32> to vector<2x4xf32>
    %cst_27 = arith.constant dense<0.000000e+00> : vector<2x128xf32>
    %32 = tpu.matmul %31, %0, %cst_27 {dimension_numbers = #tpu.dot_dimension_numbers<[1], [0], [0], [1], [0, 0, 1, 1], [], []>} : vector<2x4xf32>, vector<4x128xf32>, vector<2x128xf32> -> vector<2x128xf32>
    %33 = arith.addf %32, %5 : vector<2x128xf32>
    %c0_28 = arith.constant 0 : index
    %c7 = arith.constant 7 : index
    %c0_29 = arith.constant 0 : index
    %34 = vector.load %arg0[%c0_28, %c7, %c0_29] : memref<2x8x4xf32, #tpu.memory_space<vmem>>, vector<2x1x4xf32>
    %35 = vector.shape_cast %34 : vector<2x1x4xf32> to vector<2x4xf32>
    %cst_30 = arith.constant dense<0.000000e+00> : vector<2x128xf32>
    %36 = tpu.matmul %35, %0, %cst_30 {dimension_numbers = #tpu.dot_dimension_numbers<[1], [0], [0], [1], [0, 0, 1, 1], [], []>} : vector<2x4xf32>, vector<4x128xf32>, vector<2x128xf32> -> vector<2x128xf32>
    %37 = arith.addf %36, %5 : vector<2x128xf32>
    %cst_31 = arith.constant 0.000000e+00 : f32
    %38 = vector.broadcast %cst_31 : f32 to vector<2x32xf32>
    %39 = arith.negf %9 : vector<2x128xf32>
    %40 = math.exp %39 : vector<2x128xf32>
    %cst_32 = arith.constant 1.000000e+00 : f32
    %41 = vector.broadcast %cst_32 : f32 to vector<2x128xf32>
    %42 = arith.addf %41, %40 : vector<2x128xf32>
    %43 = arith.divf %41, %42 : vector<2x128xf32>
    %44 = math.tanh %9 : vector<2x128xf32>
    %45 = vector.extract_strided_slice %43 {offsets = [0, 0], sizes = [2, 32], strides = [1, 1]} : vector<2x128xf32> to vector<2x32xf32>
    %46 = vector.extract_strided_slice %43 {offsets = [0, 32], sizes = [2, 32], strides = [1, 1]} : vector<2x128xf32> to vector<2x32xf32>
    %47 = vector.extract_strided_slice %44 {offsets = [0, 64], sizes = [2, 32], strides = [1, 1]} : vector<2x128xf32> to vector<2x32xf32>
    %48 = vector.extract_strided_slice %43 {offsets = [0, 96], sizes = [2, 32], strides = [1, 1]} : vector<2x128xf32> to vector<2x32xf32>
    %49 = arith.mulf %45, %38 : vector<2x32xf32>
    %50 = arith.mulf %46, %47 : vector<2x32xf32>
    %51 = arith.addf %49, %50 : vector<2x32xf32>
    %52 = math.tanh %51 : vector<2x32xf32>
    %53 = arith.mulf %48, %52 : vector<2x32xf32>
    %cst_33 = arith.constant dense<0.000000e+00> : vector<2x128xf32>
    %54 = tpu.matmul %53, %1, %cst_33 {dimension_numbers = #tpu.dot_dimension_numbers<[1], [0], [0], [1], [0, 0, 1, 1], [], []>} : vector<2x32xf32>, vector<32x128xf32>, vector<2x128xf32> -> vector<2x128xf32>
    %55 = arith.addf %54, %13 : vector<2x128xf32>
    %56 = arith.negf %55 : vector<2x128xf32>
    %57 = math.exp %56 : vector<2x128xf32>
    %cst_34 = arith.constant 1.000000e+00 : f32
    %58 = vector.broadcast %cst_34 : f32 to vector<2x128xf32>
    %59 = arith.addf %58, %57 : vector<2x128xf32>
    %60 = arith.divf %58, %59 : vector<2x128xf32>
    %61 = math.tanh %55 : vector<2x128xf32>
    %62 = vector.extract_strided_slice %60 {offsets = [0, 0], sizes = [2, 32], strides = [1, 1]} : vector<2x128xf32> to vector<2x32xf32>
    %63 = vector.extract_strided_slice %60 {offsets = [0, 32], sizes = [2, 32], strides = [1, 1]} : vector<2x128xf32> to vector<2x32xf32>
    %64 = vector.extract_strided_slice %61 {offsets = [0, 64], sizes = [2, 32], strides = [1, 1]} : vector<2x128xf32> to vector<2x32xf32>
    %65 = vector.extract_strided_slice %60 {offsets = [0, 96], sizes = [2, 32], strides = [1, 1]} : vector<2x128xf32> to vector<2x32xf32>
    %66 = arith.mulf %62, %51 : vector<2x32xf32>
    %67 = arith.mulf %63, %64 : vector<2x32xf32>
    %68 = arith.addf %66, %67 : vector<2x32xf32>
    %69 = math.tanh %68 : vector<2x32xf32>
    %70 = arith.mulf %65, %69 : vector<2x32xf32>
    %cst_35 = arith.constant dense<0.000000e+00> : vector<2x128xf32>
    %71 = tpu.matmul %70, %1, %cst_35 {dimension_numbers = #tpu.dot_dimension_numbers<[1], [0], [0], [1], [0, 0, 1, 1], [], []>} : vector<2x32xf32>, vector<32x128xf32>, vector<2x128xf32> -> vector<2x128xf32>
    %72 = arith.addf %71, %17 : vector<2x128xf32>
    %73 = arith.negf %72 : vector<2x128xf32>
    %74 = math.exp %73 : vector<2x128xf32>
    %cst_36 = arith.constant 1.000000e+00 : f32
    %75 = vector.broadcast %cst_36 : f32 to vector<2x128xf32>
    %76 = arith.addf %75, %74 : vector<2x128xf32>
    %77 = arith.divf %75, %76 : vector<2x128xf32>
    %78 = math.tanh %72 : vector<2x128xf32>
    %79 = vector.extract_strided_slice %77 {offsets = [0, 0], sizes = [2, 32], strides = [1, 1]} : vector<2x128xf32> to vector<2x32xf32>
    %80 = vector.extract_strided_slice %77 {offsets = [0, 32], sizes = [2, 32], strides = [1, 1]} : vector<2x128xf32> to vector<2x32xf32>
    %81 = vector.extract_strided_slice %78 {offsets = [0, 64], sizes = [2, 32], strides = [1, 1]} : vector<2x128xf32> to vector<2x32xf32>
    %82 = vector.extract_strided_slice %77 {offsets = [0, 96], sizes = [2, 32], strides = [1, 1]} : vector<2x128xf32> to vector<2x32xf32>
    %83 = arith.mulf %79, %68 : vector<2x32xf32>
    %84 = arith.mulf %80, %81 : vector<2x32xf32>
    %85 = arith.addf %83, %84 : vector<2x32xf32>
    %86 = math.tanh %85 : vector<2x32xf32>
    %87 = arith.mulf %82, %86 : vector<2x32xf32>
    %cst_37 = arith.constant dense<0.000000e+00> : vector<2x128xf32>
    %88 = tpu.matmul %87, %1, %cst_37 {dimension_numbers = #tpu.dot_dimension_numbers<[1], [0], [0], [1], [0, 0, 1, 1], [], []>} : vector<2x32xf32>, vector<32x128xf32>, vector<2x128xf32> -> vector<2x128xf32>
    %89 = arith.addf %88, %21 : vector<2x128xf32>
    %90 = arith.negf %89 : vector<2x128xf32>
    %91 = math.exp %90 : vector<2x128xf32>
    %cst_38 = arith.constant 1.000000e+00 : f32
    %92 = vector.broadcast %cst_38 : f32 to vector<2x128xf32>
    %93 = arith.addf %92, %91 : vector<2x128xf32>
    %94 = arith.divf %92, %93 : vector<2x128xf32>
    %95 = math.tanh %89 : vector<2x128xf32>
    %96 = vector.extract_strided_slice %94 {offsets = [0, 0], sizes = [2, 32], strides = [1, 1]} : vector<2x128xf32> to vector<2x32xf32>
    %97 = vector.extract_strided_slice %94 {offsets = [0, 32], sizes = [2, 32], strides = [1, 1]} : vector<2x128xf32> to vector<2x32xf32>
    %98 = vector.extract_strided_slice %95 {offsets = [0, 64], sizes = [2, 32], strides = [1, 1]} : vector<2x128xf32> to vector<2x32xf32>
    %99 = vector.extract_strided_slice %94 {offsets = [0, 96], sizes = [2, 32], strides = [1, 1]} : vector<2x128xf32> to vector<2x32xf32>
    %100 = arith.mulf %96, %85 : vector<2x32xf32>
    %101 = arith.mulf %97, %98 : vector<2x32xf32>
    %102 = arith.addf %100, %101 : vector<2x32xf32>
    %103 = math.tanh %102 : vector<2x32xf32>
    %104 = arith.mulf %99, %103 : vector<2x32xf32>
    %cst_39 = arith.constant dense<0.000000e+00> : vector<2x128xf32>
    %105 = tpu.matmul %104, %1, %cst_39 {dimension_numbers = #tpu.dot_dimension_numbers<[1], [0], [0], [1], [0, 0, 1, 1], [], []>} : vector<2x32xf32>, vector<32x128xf32>, vector<2x128xf32> -> vector<2x128xf32>
    %106 = arith.addf %105, %25 : vector<2x128xf32>
    %107 = arith.negf %106 : vector<2x128xf32>
    %108 = math.exp %107 : vector<2x128xf32>
    %cst_40 = arith.constant 1.000000e+00 : f32
    %109 = vector.broadcast %cst_40 : f32 to vector<2x128xf32>
    %110 = arith.addf %109, %108 : vector<2x128xf32>
    %111 = arith.divf %109, %110 : vector<2x128xf32>
    %112 = math.tanh %106 : vector<2x128xf32>
    %113 = vector.extract_strided_slice %111 {offsets = [0, 0], sizes = [2, 32], strides = [1, 1]} : vector<2x128xf32> to vector<2x32xf32>
    %114 = vector.extract_strided_slice %111 {offsets = [0, 32], sizes = [2, 32], strides = [1, 1]} : vector<2x128xf32> to vector<2x32xf32>
    %115 = vector.extract_strided_slice %112 {offsets = [0, 64], sizes = [2, 32], strides = [1, 1]} : vector<2x128xf32> to vector<2x32xf32>
    %116 = vector.extract_strided_slice %111 {offsets = [0, 96], sizes = [2, 32], strides = [1, 1]} : vector<2x128xf32> to vector<2x32xf32>
    %117 = arith.mulf %113, %102 : vector<2x32xf32>
    %118 = arith.mulf %114, %115 : vector<2x32xf32>
    %119 = arith.addf %117, %118 : vector<2x32xf32>
    %120 = math.tanh %119 : vector<2x32xf32>
    %121 = arith.mulf %116, %120 : vector<2x32xf32>
    %cst_41 = arith.constant dense<0.000000e+00> : vector<2x128xf32>
    %122 = tpu.matmul %121, %1, %cst_41 {dimension_numbers = #tpu.dot_dimension_numbers<[1], [0], [0], [1], [0, 0, 1, 1], [], []>} : vector<2x32xf32>, vector<32x128xf32>, vector<2x128xf32> -> vector<2x128xf32>
    %123 = arith.addf %122, %29 : vector<2x128xf32>
    %124 = arith.negf %123 : vector<2x128xf32>
    %125 = math.exp %124 : vector<2x128xf32>
    %cst_42 = arith.constant 1.000000e+00 : f32
    %126 = vector.broadcast %cst_42 : f32 to vector<2x128xf32>
    %127 = arith.addf %126, %125 : vector<2x128xf32>
    %128 = arith.divf %126, %127 : vector<2x128xf32>
    %129 = math.tanh %123 : vector<2x128xf32>
    %130 = vector.extract_strided_slice %128 {offsets = [0, 0], sizes = [2, 32], strides = [1, 1]} : vector<2x128xf32> to vector<2x32xf32>
    %131 = vector.extract_strided_slice %128 {offsets = [0, 32], sizes = [2, 32], strides = [1, 1]} : vector<2x128xf32> to vector<2x32xf32>
    %132 = vector.extract_strided_slice %129 {offsets = [0, 64], sizes = [2, 32], strides = [1, 1]} : vector<2x128xf32> to vector<2x32xf32>
    %133 = vector.extract_strided_slice %128 {offsets = [0, 96], sizes = [2, 32], strides = [1, 1]} : vector<2x128xf32> to vector<2x32xf32>
    %134 = arith.mulf %130, %119 : vector<2x32xf32>
    %135 = arith.mulf %131, %132 : vector<2x32xf32>
    %136 = arith.addf %134, %135 : vector<2x32xf32>
    %137 = math.tanh %136 : vector<2x32xf32>
    %138 = arith.mulf %133, %137 : vector<2x32xf32>
    %cst_43 = arith.constant dense<0.000000e+00> : vector<2x128xf32>
    %139 = tpu.matmul %138, %1, %cst_43 {dimension_numbers = #tpu.dot_dimension_numbers<[1], [0], [0], [1], [0, 0, 1, 1], [], []>} : vector<2x32xf32>, vector<32x128xf32>, vector<2x128xf32> -> vector<2x128xf32>
    %140 = arith.addf %139, %33 : vector<2x128xf32>
    %141 = arith.negf %140 : vector<2x128xf32>
    %142 = math.exp %141 : vector<2x128xf32>
    %cst_44 = arith.constant 1.000000e+00 : f32
    %143 = vector.broadcast %cst_44 : f32 to vector<2x128xf32>
    %144 = arith.addf %143, %142 : vector<2x128xf32>
    %145 = arith.divf %143, %144 : vector<2x128xf32>
    %146 = math.tanh %140 : vector<2x128xf32>
    %147 = vector.extract_strided_slice %145 {offsets = [0, 0], sizes = [2, 32], strides = [1, 1]} : vector<2x128xf32> to vector<2x32xf32>
    %148 = vector.extract_strided_slice %145 {offsets = [0, 32], sizes = [2, 32], strides = [1, 1]} : vector<2x128xf32> to vector<2x32xf32>
    %149 = vector.extract_strided_slice %146 {offsets = [0, 64], sizes = [2, 32], strides = [1, 1]} : vector<2x128xf32> to vector<2x32xf32>
    %150 = vector.extract_strided_slice %145 {offsets = [0, 96], sizes = [2, 32], strides = [1, 1]} : vector<2x128xf32> to vector<2x32xf32>
    %151 = arith.mulf %147, %136 : vector<2x32xf32>
    %152 = arith.mulf %148, %149 : vector<2x32xf32>
    %153 = arith.addf %151, %152 : vector<2x32xf32>
    %154 = math.tanh %153 : vector<2x32xf32>
    %155 = arith.mulf %150, %154 : vector<2x32xf32>
    %cst_45 = arith.constant dense<0.000000e+00> : vector<2x128xf32>
    %156 = tpu.matmul %155, %1, %cst_45 {dimension_numbers = #tpu.dot_dimension_numbers<[1], [0], [0], [1], [0, 0, 1, 1], [], []>} : vector<2x32xf32>, vector<32x128xf32>, vector<2x128xf32> -> vector<2x128xf32>
    %157 = arith.addf %156, %37 : vector<2x128xf32>
    %158 = arith.negf %157 : vector<2x128xf32>
    %159 = math.exp %158 : vector<2x128xf32>
    %cst_46 = arith.constant 1.000000e+00 : f32
    %160 = vector.broadcast %cst_46 : f32 to vector<2x128xf32>
    %161 = arith.addf %160, %159 : vector<2x128xf32>
    %162 = arith.divf %160, %161 : vector<2x128xf32>
    %163 = math.tanh %157 : vector<2x128xf32>
    %164 = vector.extract_strided_slice %162 {offsets = [0, 0], sizes = [2, 32], strides = [1, 1]} : vector<2x128xf32> to vector<2x32xf32>
    %165 = vector.extract_strided_slice %162 {offsets = [0, 32], sizes = [2, 32], strides = [1, 1]} : vector<2x128xf32> to vector<2x32xf32>
    %166 = vector.extract_strided_slice %163 {offsets = [0, 64], sizes = [2, 32], strides = [1, 1]} : vector<2x128xf32> to vector<2x32xf32>
    %167 = vector.extract_strided_slice %162 {offsets = [0, 96], sizes = [2, 32], strides = [1, 1]} : vector<2x128xf32> to vector<2x32xf32>
    %168 = arith.mulf %164, %153 : vector<2x32xf32>
    %169 = arith.mulf %165, %166 : vector<2x32xf32>
    %170 = arith.addf %168, %169 : vector<2x32xf32>
    %171 = math.tanh %170 : vector<2x32xf32>
    %172 = arith.mulf %167, %171 : vector<2x32xf32>
    %cst_47 = arith.constant dense<0.000000e+00> : vector<2x2xf32>
    %173 = tpu.matmul %172, %2, %cst_47 {dimension_numbers = #tpu.dot_dimension_numbers<[1], [0], [0], [1], [0, 0, 1, 1], [], []>} : vector<2x32xf32>, vector<32x2xf32>, vector<2x2xf32> -> vector<2x2xf32>
    %c0_48 = arith.constant 0 : index
    %c0_49 = arith.constant 0 : index
    %174 = vector.load %arg5[%c0_48, %c0_49] : memref<1x2xf32, #tpu.memory_space<vmem>>, vector<1x2xf32>
    %175 = vector.broadcast %174 : vector<1x2xf32> to vector<2x2xf32>
    %176 = arith.addf %173, %175 : vector<2x2xf32>
    %c0_50 = arith.constant 0 : index
    %c0_51 = arith.constant 0 : index
    %177 = vector.load %arg6[%c0_50, %c0_51] : memref<2x2xf32, #tpu.memory_space<vmem>>, vector<2x2xf32>
    tpu.vector_store %arg6[%c0_50, %c0_51], %176 {strides = array<i32>} : memref<2x2xf32, #tpu.memory_space<vmem>>, vector<2x2xf32>,
    return
  }
}

</mosaic_0001>

<llo_original>
// kernel: tpu_custom_call.1
$region0: #{tpu_custom_call.1}
  #allocation0 [shape = 'u32[]', space=smem, size = 0x4, offset = 0x4, fixed_abs, tag = 'smem constant byte address 0x4 - core index']
  #allocation1 [shape = 'u32[72,128]{1,0:T(1,128)}', space=vmem, size = 0x9000, scoped, tag = 'internal scratch']
  %s0 = inlined_call_operand.vmem [shape: f32[2,8,4], index: 0, kind: input, shape index: {}]
  %s1 = inlined_call_operand.vmem [shape: f32[4,128], index: 1, kind: input, shape index: {}]
  %s2 = inlined_call_operand.vmem [shape: f32[32,128], index: 2, kind: input, shape index: {}]
  %s3 = inlined_call_operand.vmem [shape: f32[1,128], index: 3, kind: input, shape index: {}]
  %s4 = inlined_call_operand.vmem [shape: f32[32,2], index: 4, kind: input, shape index: {}]
  %s5 = inlined_call_operand.vmem [shape: f32[1,2], index: 5, kind: input, shape index: {}]
  %s6 = inlined_call_operand.hbm [shape: f32[2,2], index: 6, kind: output, shape index: {}]
  %s7 = sld [smem:[#allocation0]]
  $region34: #{tpu_custom_call.1} parent=0
    _
  %s9 = ssub.s32 1, %s7
  %s10 = scalar_select 0, %s9, %s7
  $region1: #{tpu_custom_call.1} parent=0
    #allocation2 [shape = 'u8[1024]{0}', space=vmem, size = 0x400, scoped, tag = 'output window, operand 0, single buffered']
    #allocation3 [shape = 's32[1]{0}', space=sflag, size = 0x4, scoped, tag = 'scoped memory for tpu_custom_call.1']
    %11 = vsyncpa [#allocation3], 0
    // Predicated region
    $region2: #{tpu_custom_call.1} parent=1 // pred_check
      _
    $region3: #{tpu_custom_call.1} parent=1 // pred_check_branch
      %13 = sbr.rel (0) target = $region5
    $region4: #{tpu_custom_call.1} parent=1 // pred_region
      _
    $region5: #{tpu_custom_call.1} parent=1 // pred_fallthru
      _
    // Predicated region
    $region6: #{tpu_custom_call.1} parent=1 // pred_check
      _
    $region7: #{tpu_custom_call.1} parent=1 // pred_check_branch
      %15 = sbr.rel (0) target = $region9
    $region8: #{tpu_custom_call.1} parent=1 // pred_region
      _
    $region9: #{tpu_custom_call.1} parent=1 // pred_fallthru
      _
    // Predicated region
    $region10: #{tpu_custom_call.1} parent=1 // pred_check
      _
    $region11: #{tpu_custom_call.1} parent=1 // pred_check_branch
      %17 = sbr.rel (0) target = $region13
    $region12: #{tpu_custom_call.1} parent=1 // pred_region
      _
    $region13: #{tpu_custom_call.1} parent=1 // pred_fallthru
      _
    // Predicated region
    $region14: #{tpu_custom_call.1} parent=1 // pred_check
      _
    $region15: #{tpu_custom_call.1} parent=1 // pred_check_branch
      %19 = sbr.rel (0) target = $region17
    $region16: #{tpu_custom_call.1} parent=1 // pred_region
      _
    $region17: #{tpu_custom_call.1} parent=1 // pred_fallthru
      _
    // Predicated region
    $region18: #{tpu_custom_call.1} parent=1 // pred_check
      _
    $region19: #{tpu_custom_call.1} parent=1 // pred_check_branch
      %21 = sbr.rel (0) target = $region21
    $region20: #{tpu_custom_call.1} parent=1 // pred_region
      _
    $region21: #{tpu_custom_call.1} parent=1 // pred_fallthru
      _
    // Predicated region
    $region22: #{tpu_custom_call.1} parent=1 // pred_check
      _
    $region23: #{tpu_custom_call.1} parent=1 // pred_check_branch
      %23 = sbr.rel (0) target = $region25
    $region24: #{tpu_custom_call.1} parent=1 // pred_region
      _
    $region25: #{tpu_custom_call.1} parent=1 // pred_fallthru
      _
    %v24 = vld [vmem:[%s1] sm:$0xf]
    %v25 = vld [vmem:[%s2] sm:$0xff]
    %v26 = vld [vmem:[%s2 + $0x8] sm:$0xff]
    %v27 = vld [vmem:[%s2 + $0x10] sm:$0xff]
    %v28 = vld [vmem:[%s2 + $0x18] sm:$0xff]
    %v29 = vld [vmem:[%s4] sm:$0xff]
    %v30 = vld [vmem:[%s4 + $0x8] sm:$0xff]
    %v31 = vld [vmem:[%s4 + $0x10] sm:$0xff]
    %v32 = vld [vmem:[%s4 + $0x18] sm:$0xff]
    %v33 = vld [vmem:[%s3] sm:$0x1]
    %v35 = vperm.slane %v33, 0
    %v37 = vld [vmem:[%s0] sm:$0x1]
    %v38 = vld [vmem:[%s0 + $0x8] sm:$0x1]
    %v41 = vrot.slane %v38, 7
    %vm42 = vcmask 1041409
    %v43 = vsel %vm42, %v41, %v37
    %vm44 = vcmask 31744
    %v45 = vsel %vm44, %v43, 0
    %vm47 = vcmask 1043456
    %v49 = vsel %vm47, %v24, 0
    %51 = vmatpush.msra.mxu0 0.0
    %52 = vmatpush.msra.mxu0 0.0
    %53 = vmatpush.msra.mxu0 0.0
    %54 = vmatpush.msra.mxu0 0.0
    %55 = vmatpush.msra.mxu0 0.0
    %56 = vmatpush.msra.mxu0 0.0
    %57 = vmatpush.msra.mxu0 0.0
    %58 = vmatpush.msra.mxu0 0.0
    %59 = vmatpush.msra.mxu0 0.0
    %60 = vmatpush.msra.mxu0 0.0
    %61 = vmatpush.msra.mxu0 0.0
    %62 = vmatpush.msra.mxu0 0.0
    %63 = vmatpush.msra.mxu0 0.0
    %64 = vmatpush.msra.mxu0 0.0
    %65 = vmatpush.msra.mxu0 0.0
    %66 = vmatpush.msra.mxu0 %v49
    %67 = vmatmul.f32.gmra.mxu0 %v45
    %v68 = vpop.f32.mrf.mxu0
    %v69 = vadd.f32 %v35, %v68
    %70 = vdwg.mxu0
    %v71 = vld [vmem:[%s0 + $0x1] sm:$0x1]
    %v72 = vld [vmem:[%s0 + $0x9] sm:$0x1]
    %v75 = vrot.slane %v72, 7
    %v76 = vsel %vm42, %v75, %v71
    %v77 = vsel %vm44, %v76, 0
    %79 = vmatpush.msra.mxu0 0.0
    %80 = vmatpush.msra.mxu0 0.0
    %81 = vmatpush.msra.mxu0 0.0
    %82 = vmatpush.msra.mxu0 0.0
    %83 = vmatpush.msra.mxu0 0.0
    %84 = vmatpush.msra.mxu0 0.0
    %85 = vmatpush.msra.mxu0 0.0
    %86 = vmatpush.msra.mxu0 0.0
    %87 = vmatpush.msra.mxu0 0.0
    %88 = vmatpush.msra.mxu0 0.0
    %89 = vmatpush.msra.mxu0 0.0
    %90 = vmatpush.msra.mxu0 0.0
    %91 = vmatpush.msra.mxu0 0.0
    %92 = vmatpush.msra.mxu0 0.0
    %93 = vmatpush.msra.mxu0 0.0
    %94 = vmatpush.msra.mxu0 %v49
    %95 = vmatmul.f32.gmra.mxu0 %v77
    %v96 = vpop.f32.mrf.mxu0
    %v97 = vadd.f32 %v35, %v96
    %98 = vdwg.mxu0
    %v99 = vld [vmem:[%s0 + $0x2] sm:$0x1]
    %v100 = vld [vmem:[%s0 + $0xa] sm:$0x1]
    %v103 = vrot.slane %v100, 7
    %v104 = vsel %vm42, %v103, %v99
    %v105 = vsel %vm44, %v104, 0
    %107 = vmatpush.msra.mxu0 0.0
    %108 = vmatpush.msra.mxu0 0.0
    %109 = vmatpush.msra.mxu0 0.0
    %110 = vmatpush.msra.mxu0 0.0
    %111 = vmatpush.msra.mxu0 0.0
    %112 = vmatpush.msra.mxu0 0.0
    %113 = vmatpush.msra.mxu0 0.0
    %114 = vmatpush.msra.mxu0 0.0
    %115 = vmatpush.msra.mxu0 0.0
    %116 = vmatpush.msra.mxu0 0.0
    %117 = vmatpush.msra.mxu0 0.0
    %118 = vmatpush.msra.mxu0 0.0
    %119 = vmatpush.msra.mxu0 0.0
    %120 = vmatpush.msra.mxu0 0.0
    %121 = vmatpush.msra.mxu0 0.0
    %122 = vmatpush.msra.mxu0 %v49
    %123 = vmatmul.f32.gmra.mxu0 %v105
    %v124 = vpop.f32.mrf.mxu0
    %v125 = vadd.f32 %v35, %v124
    %126 = vdwg.mxu0
    %v127 = vld [vmem:[%s0 + $0x3] sm:$0x1]
    %v128 = vld [vmem:[%s0 + $0xb] sm:$0x1]
    %v131 = vrot.slane %v128, 7
    %v132 = vsel %vm42, %v131, %v127
    %v133 = vsel %vm44, %v132, 0
    %135 = vmatpush.msra.mxu0 0.0
    %136 = vmatpush.msra.mxu0 0.0
    %137 = vmatpush.msra.mxu0 0.0
    %138 = vmatpush.msra.mxu0 0.0
    %139 = vmatpush.msra.mxu0 0.0
    %140 = vmatpush.msra.mxu0 0.0
    %141 = vmatpush.msra.mxu0 0.0
    %142 = vmatpush.msra.mxu0 0.0
    %143 = vmatpush.msra.mxu0 0.0
    %144 = vmatpush.msra.mxu0 0.0
    %145 = vmatpush.msra.mxu0 0.0
    %146 = vmatpush.msra.mxu0 0.0
    %147 = vmatpush.msra.mxu0 0.0
    %148 = vmatpush.msra.mxu0 0.0
    %149 = vmatpush.msra.mxu0 0.0
    %150 = vmatpush.msra.mxu0 %v49
    %151 = vmatmul.f32.gmra.mxu0 %v133
    %v152 = vpop.f32.mrf.mxu0
    %v153 = vadd.f32 %v35, %v152
    %154 = vdwg.mxu0
    %v155 = vld [vmem:[%s0 + $0x4] sm:$0x1]
    %v156 = vld [vmem:[%s0 + $0xc] sm:$0x1]
    %v159 = vrot.slane %v156, 7
    %v160 = vsel %vm42, %v159, %v155
    %v161 = vsel %vm44, %v160, 0
    %163 = vmatpush.msra.mxu0 0.0
    %164 = vmatpush.msra.mxu0 0.0
    %165 = vmatpush.msra.mxu0 0.0
    %166 = vmatpush.msra.mxu0 0.0
    %167 = vmatpush.msra.mxu0 0.0
    %168 = vmatpush.msra.mxu0 0.0
    %169 = vmatpush.msra.mxu0 0.0
    %170 = vmatpush.msra.mxu0 0.0
    %171 = vmatpush.msra.mxu0 0.0
    %172 = vmatpush.msra.mxu0 0.0
    %173 = vmatpush.msra.mxu0 0.0
    %174 = vmatpush.msra.mxu0 0.0
    %175 = vmatpush.msra.mxu0 0.0
    %176 = vmatpush.msra.mxu0 0.0
    %177 = vmatpush.msra.mxu0 0.0
    %178 = vmatpush.msra.mxu0 %v49
    %179 = vmatmul.f32.gmra.mxu0 %v161
    %v180 = vpop.f32.mrf.mxu0
    %v181 = vadd.f32 %v35, %v180
    %182 = vdwg.mxu0
    %v183 = vld [vmem:[%s0 + $0x5] sm:$0x1]
    %v184 = vld [vmem:[%s0 + $0xd] sm:$0x1]
    %v187 = vrot.slane %v184, 7
    %v188 = vsel %vm42, %v187, %v183
    %v189 = vsel %vm44, %v188, 0
    %191 = vmatpush.msra.mxu0 0.0
    %192 = vmatpush.msra.mxu0 0.0
    %193 = vmatpush.msra.mxu0 0.0
    %194 = vmatpush.msra.mxu0 0.0
    %195 = vmatpush.msra.mxu0 0.0
    %196 = vmatpush.msra.mxu0 0.0
    %197 = vmatpush.msra.mxu0 0.0
    %198 = vmatpush.msra.mxu0 0.0
    %199 = vmatpush.msra.mxu0 0.0
    %200 = vmatpush.msra.mxu0 0.0
    %201 = vmatpush.msra.mxu0 0.0
    %202 = vmatpush.msra.mxu0 0.0
    %203 = vmatpush.msra.mxu0 0.0
    %204 = vmatpush.msra.mxu0 0.0
    %205 = vmatpush.msra.mxu0 0.0
    %206 = vmatpush.msra.mxu0 %v49
    %207 = vmatmul.f32.gmra.mxu0 %v189
    %v208 = vpop.f32.mrf.mxu0
    %v209 = vadd.f32 %v35, %v208
    %210 = vdwg.mxu0
    %v211 = vld [vmem:[%s0 + $0x6] sm:$0x1]
    %v212 = vld [vmem:[%s0 + $0xe] sm:$0x1]
    %v215 = vrot.slane %v212, 7
    %v216 = vsel %vm42, %v215, %v211
    %v217 = vsel %vm44, %v216, 0
    %219 = vmatpush.msra.mxu0 0.0
    %220 = vmatpush.msra.mxu0 0.0
    %221 = vmatpush.msra.mxu0 0.0
    %222 = vmatpush.msra.mxu0 0.0
    %223 = vmatpush.msra.mxu0 0.0
    %224 = vmatpush.msra.mxu0 0.0
    %225 = vmatpush.msra.mxu0 0.0
    %226 = vmatpush.msra.mxu0 0.0
    %227 = vmatpush.msra.mxu0 0.0
    %228 = vmatpush.msra.mxu0 0.0
    %229 = vmatpush.msra.mxu0 0.0
    %230 = vmatpush.msra.mxu0 0.0
    %231 = vmatpush.msra.mxu0 0.0
    %232 = vmatpush.msra.mxu0 0.0
    %233 = vmatpush.msra.mxu0 0.0
    %234 = vmatpush.msra.mxu0 %v49
    %235 = vmatmul.f32.gmra.mxu0 %v217
    %v236 = vpop.f32.mrf.mxu0
    %v237 = vadd.f32 %v35, %v236
    %238 = vdwg.mxu0
    %v239 = vld [vmem:[%s0 + $0x7] sm:$0x1]
    %v240 = vld [vmem:[%s0 + $0xf] sm:$0x1]
    %v243 = vrot.slane %v240, 7
    %v244 = vsel %vm42, %v243, %v239
    %v245 = vsel %vm44, %v244, 0
    %247 = vmatpush.msra.mxu0 0.0
    %248 = vmatpush.msra.mxu0 0.0
    %249 = vmatpush.msra.mxu0 0.0
    %250 = vmatpush.msra.mxu0 0.0
    %251 = vmatpush.msra.mxu0 0.0
    %252 = vmatpush.msra.mxu0 0.0
    %253 = vmatpush.msra.mxu0 0.0
    %254 = vmatpush.msra.mxu0 0.0
    %255 = vmatpush.msra.mxu0 0.0
    %256 = vmatpush.msra.mxu0 0.0
    %257 = vmatpush.msra.mxu0 0.0
    %258 = vmatpush.msra.mxu0 0.0
    %259 = vmatpush.msra.mxu0 0.0
    %260 = vmatpush.msra.mxu0 0.0
    %261 = vmatpush.msra.mxu0 0.0
    %262 = vmatpush.msra.mxu0 %v49
    %263 = vmatmul.f32.gmra.mxu0 %v245
    %v264 = vpop.f32.mrf.mxu0
    %v265 = vadd.f32 %v35, %v264
    %266 = vdwg.mxu0
    %v267 = vxor.u32 %v69, 2147483648
    %v268 = vmul.f32 %v267, 1.442695
    %v269 = vpow.pop %v268
    %v270 = vadd.f32 %v269, 1.0
    %v271 = vrcp.pop %v270
    %v272 = vmul.f32 %v270, %v271
    %v273 = vsub.f32 1.0, %v272
    %v274 = vmul.f32 %v271, %v273
    %v275 = vadd.f32 %v271, %v274
    %vm276 = vweird.f32 %v270
    %vm277 = vweird.f32 %v271
    %vm278 = vmor %vm276, %vm277
    %v279 = vsel %vm278, %v271, %v275
    %v280 = vand.u32 2147483647, %v270
    %vm281 = vcmp.eq.f32.partialorder %v280, 8.507059e+37
    %v282 = vand.u32 %v270, 2147483648
    %v283 = vor.u32 1.1754944e-38, %v282
    %v284 = vsel %vm281, %v283, %v279
    %v285 = vmul.f32 1.0, %v284
    %v286 = vtanh.pop %v69
    %v287 = vmul.f32 %v285, 0.0
    %289 = vrot.lane.b32.xlu0 %v286, 96
    %v290 = vpop.permute.xlu0 %289
    %v292 = vmul.f32 %v285, %v290
    %294 = vrot.lane.b32.xlu0 %v292, 96
    %v295 = vpop.permute.xlu0 %294
    %v297 = vadd.f32 %v287, %v295
    %v298 = vtanh.pop %v297
    %300 = vrot.lane.b32.xlu0 %v298, 96
    %v301 = vpop.permute.xlu0 %300
    %v303 = vmul.f32 %v285, %v301
    %305 = vrot.lane.b32.xlu0 %v303, 32
    %v306 = vpop.permute.xlu0 %305
    %vm307 = vcmask 261120
    %v308 = vsel %vm307, %v306, 0
    %310 = vmatpush.msra.mxu0 0.0
    %311 = vmatpush.msra.mxu0 0.0
    %312 = vmatpush.msra.mxu0 0.0
    %313 = vmatpush.msra.mxu0 0.0
    %314 = vmatpush.msra.mxu0 0.0
    %315 = vmatpush.msra.mxu0 0.0
    %316 = vmatpush.msra.mxu0 0.0
    %317 = vmatpush.msra.mxu0 0.0
    %318 = vmatpush.msra.mxu0 0.0
    %319 = vmatpush.msra.mxu0 0.0
    %320 = vmatpush.msra.mxu0 0.0
    %321 = vmatpush.msra.mxu0 0.0
    %322 = vmatpush.msra.mxu0 %v28
    %323 = vmatpush.msra.mxu0 %v27
    %324 = vmatpush.msra.mxu0 %v26
    %325 = vmatpush.msra.mxu0 %v25
    %326 = vmatmul.f32.gmra.mxu0 %v308
    %v327 = vpop.f32.mrf.mxu0
    %v328 = vadd.f32 %v97, %v327
    %329 = vdwg.mxu0
    %v330 = vxor.u32 %v328, 2147483648
    %v331 = vmul.f32 %v330, 1.442695
    %v332 = vpow.pop %v331
    %v333 = vadd.f32 %v332, 1.0
    %v334 = vrcp.pop %v333
    %v335 = vmul.f32 %v333, %v334
    %v336 = vsub.f32 1.0, %v335
    %v337 = vmul.f32 %v334, %v336
    %v338 = vadd.f32 %v334, %v337
    %vm339 = vweird.f32 %v333
    %vm340 = vweird.f32 %v334
    %vm341 = vmor %vm339, %vm340
    %v342 = vsel %vm341, %v334, %v338
    %v343 = vand.u32 2147483647, %v333
    %vm344 = vcmp.eq.f32.partialorder %v343, 8.507059e+37
    %v345 = vand.u32 %v333, 2147483648
    %v346 = vor.u32 1.1754944e-38, %v345
    %v347 = vsel %vm344, %v346, %v342
    %v348 = vmul.f32 1.0, %v347
    %v349 = vtanh.pop %v328
    %v350 = vmul.f32 %v348, %v297
    %352 = vrot.lane.b32.xlu0 %v349, 96
    %v353 = vpop.permute.xlu0 %352
    %v355 = vmul.f32 %v348, %v353
    %357 = vrot.lane.b32.xlu0 %v355, 96
    %v358 = vpop.permute.xlu0 %357
    %v360 = vadd.f32 %v350, %v358
    %v361 = vtanh.pop %v360
    %363 = vrot.lane.b32.xlu0 %v361, 96
    %v364 = vpop.permute.xlu0 %363
    %v366 = vmul.f32 %v348, %v364
    %368 = vrot.lane.b32.xlu0 %v366, 32
    %v369 = vpop.permute.xlu0 %368
    %v370 = vsel %vm307, %v369, 0
    %372 = vmatpush.msra.mxu0 0.0
    %373 = vmatpush.msra.mxu0 0.0
    %374 = vmatpush.msra.mxu0 0.0
    %375 = vmatpush.msra.mxu0 0.0
    %376 = vmatpush.msra.mxu0 0.0
    %377 = vmatpush.msra.mxu0 0.0
    %378 = vmatpush.msra.mxu0 0.0
    %379 = vmatpush.msra.mxu0 0.0
    %380 = vmatpush.msra.mxu0 0.0
    %381 = vmatpush.msra.mxu0 0.0
    %382 = vmatpush.msra.mxu0 0.0
    %383 = vmatpush.msra.mxu0 0.0
    %384 = vmatpush.msra.mxu0 %v28
    %385 = vmatpush.msra.mxu0 %v27
    %386 = vmatpush.msra.mxu0 %v26
    %387 = vmatpush.msra.mxu0 %v25
    %388 = vmatmul.f32.gmra.mxu0 %v370
    %v389 = vpop.f32.mrf.mxu0
    %v390 = vadd.f32 %v125, %v389
    %391 = vdwg.mxu0
    %v392 = vxor.u32 %v390, 2147483648
    %v393 = vmul.f32 %v392, 1.442695
    %v394 = vpow.pop %v393
    %v395 = vadd.f32 %v394, 1.0
    %v396 = vrcp.pop %v395
    %v397 = vmul.f32 %v395, %v396
    %v398 = vsub.f32 1.0, %v397
    %v399 = vmul.f32 %v396, %v398
    %v400 = vadd.f32 %v396, %v399
    %vm401 = vweird.f32 %v395
    %vm402 = vweird.f32 %v396
    %vm403 = vmor %vm401, %vm402
    %v404 = vsel %vm403, %v396, %v400
    %v405 = vand.u32 2147483647, %v395
    %vm406 = vcmp.eq.f32.partialorder %v405, 8.507059e+37
    %v407 = vand.u32 %v395, 2147483648
    %v408 = vor.u32 1.1754944e-38, %v407
    %v409 = vsel %vm406, %v408, %v404
    %v410 = vmul.f32 1.0, %v409
    %v411 = vtanh.pop %v390
    %v412 = vmul.f32 %v410, %v360
    %414 = vrot.lane.b32.xlu0 %v411, 96
    %v415 = vpop.permute.xlu0 %414
    %v417 = vmul.f32 %v410, %v415
    %419 = vrot.lane.b32.xlu0 %v417, 96
    %v420 = vpop.permute.xlu0 %419
    %v422 = vadd.f32 %v412, %v420
    %v423 = vtanh.pop %v422
    %425 = vrot.lane.b32.xlu0 %v423, 96
    %v426 = vpop.permute.xlu0 %425
    %v428 = vmul.f32 %v410, %v426
    %430 = vrot.lane.b32.xlu0 %v428, 32
    %v431 = vpop.permute.xlu0 %430
    %v432 = vsel %vm307, %v431, 0
    %434 = vmatpush.msra.mxu0 0.0
    %435 = vmatpush.msra.mxu0 0.0
    %436 = vmatpush.msra.mxu0 0.0
    %437 = vmatpush.msra.mxu0 0.0
    %438 = vmatpush.msra.mxu0 0.0
    %439 = vmatpush.msra.mxu0 0.0
    %440 = vmatpush.msra.mxu0 0.0
    %441 = vmatpush.msra.mxu0 0.0
    %442 = vmatpush.msra.mxu0 0.0
    %443 = vmatpush.msra.mxu0 0.0
    %444 = vmatpush.msra.mxu0 0.0
    %445 = vmatpush.msra.mxu0 0.0
    %446 = vmatpush.msra.mxu0 %v28
    %447 = vmatpush.msra.mxu0 %v27
    %448 = vmatpush.msra.mxu0 %v26
    %449 = vmatpush.msra.mxu0 %v25
    %450 = vmatmul.f32.gmra.mxu0 %v432
    %v451 = vpop.f32.mrf.mxu0
    %v452 = vadd.f32 %v153, %v451
    %453 = vdwg.mxu0
    %v454 = vxor.u32 %v452, 2147483648
    %v455 = vmul.f32 %v454, 1.442695
    %v456 = vpow.pop %v455
    %v457 = vadd.f32 %v456, 1.0
    %v458 = vrcp.pop %v457
    %v459 = vmul.f32 %v457, %v458
    %v460 = vsub.f32 1.0, %v459
    %v461 = vmul.f32 %v458, %v460
    %v462 = vadd.f32 %v458, %v461
    %vm463 = vweird.f32 %v457
    %vm464 = vweird.f32 %v458
    %vm465 = vmor %vm463, %vm464
    %v466 = vsel %vm465, %v458, %v462
    %v467 = vand.u32 2147483647, %v457
    %vm468 = vcmp.eq.f32.partialorder %v467, 8.507059e+37
    %v469 = vand.u32 %v457, 2147483648
    %v470 = vor.u32 1.1754944e-38, %v469
    %v471 = vsel %vm468, %v470, %v466
    %v472 = vmul.f32 1.0, %v471
    %v473 = vtanh.pop %v452
    %v474 = vmul.f32 %v472, %v422
    %476 = vrot.lane.b32.xlu0 %v473, 96
    %v477 = vpop.permute.xlu0 %476
    %v479 = vmul.f32 %v472, %v477
    %481 = vrot.lane.b32.xlu0 %v479, 96
    %v482 = vpop.permute.xlu0 %481
    %v484 = vadd.f32 %v474, %v482
    %v485 = vtanh.pop %v484
    %487 = vrot.lane.b32.xlu0 %v485, 96
    %v488 = vpop.permute.xlu0 %487
    %v490 = vmul.f32 %v472, %v488
    %492 = vrot.lane.b32.xlu0 %v490, 32
    %v493 = vpop.permute.xlu0 %492
    %v494 = vsel %vm307, %v493, 0
    %496 = vmatpush.msra.mxu0 0.0
    %497 = vmatpush.msra.mxu0 0.0
    %498 = vmatpush.msra.mxu0 0.0
    %499 = vmatpush.msra.mxu0 0.0
    %500 = vmatpush.msra.mxu0 0.0
    %501 = vmatpush.msra.mxu0 0.0
    %502 = vmatpush.msra.mxu0 0.0
    %503 = vmatpush.msra.mxu0 0.0
    %504 = vmatpush.msra.mxu0 0.0
    %505 = vmatpush.msra.mxu0 0.0
    %506 = vmatpush.msra.mxu0 0.0
    %507 = vmatpush.msra.mxu0 0.0
    %508 = vmatpush.msra.mxu0 %v28
    %509 = vmatpush.msra.mxu0 %v27
    %510 = vmatpush.msra.mxu0 %v26
    %511 = vmatpush.msra.mxu0 %v25
    %512 = vmatmul.f32.gmra.mxu0 %v494
    %v513 = vpop.f32.mrf.mxu0
    %v514 = vadd.f32 %v181, %v513
    %515 = vdwg.mxu0
    %v516 = vxor.u32 %v514, 2147483648
    %v517 = vmul.f32 %v516, 1.442695
    %v518 = vpow.pop %v517
    %v519 = vadd.f32 %v518, 1.0
    %v520 = vrcp.pop %v519
    %v521 = vmul.f32 %v519, %v520
    %v522 = vsub.f32 1.0, %v521
    %v523 = vmul.f32 %v520, %v522
    %v524 = vadd.f32 %v520, %v523
    %vm525 = vweird.f32 %v519
    %vm526 = vweird.f32 %v520
    %vm527 = vmor %vm525, %vm526
    %v528 = vsel %vm527, %v520, %v524
    %v529 = vand.u32 2147483647, %v519
    %vm530 = vcmp.eq.f32.partialorder %v529, 8.507059e+37
    %v531 = vand.u32 %v519, 2147483648
    %v532 = vor.u32 1.1754944e-38, %v531
    %v533 = vsel %vm530, %v532, %v528
    %v534 = vmul.f32 1.0, %v533
    %v535 = vtanh.pop %v514
    %v536 = vmul.f32 %v534, %v484
    %538 = vrot.lane.b32.xlu0 %v535, 96
    %v539 = vpop.permute.xlu0 %538
    %v541 = vmul.f32 %v534, %v539
    %543 = vrot.lane.b32.xlu0 %v541, 96
    %v544 = vpop.permute.xlu0 %543
    %v546 = vadd.f32 %v536, %v544
    %v547 = vtanh.pop %v546
    %549 = vrot.lane.b32.xlu0 %v547, 96
    %v550 = vpop.permute.xlu0 %549
    %v552 = vmul.f32 %v534, %v550
    %554 = vrot.lane.b32.xlu0 %v552, 32
    %v555 = vpop.permute.xlu0 %554
    %v556 = vsel %vm307, %v555, 0
    %558 = vmatpush.msra.mxu0 0.0
    %559 = vmatpush.msra.mxu0 0.0
    %560 = vmatpush.msra.mxu0 0.0
    %561 = vmatpush.msra.mxu0 0.0
    %562 = vmatpush.msra.mxu0 0.0
    %563 = vmatpush.msra.mxu0 0.0
    %564 = vmatpush.msra.mxu0 0.0
    %565 = vmatpush.msra.mxu0 0.0
    %566 = vmatpush.msra.mxu0 0.0
    %567 = vmatpush.msra.mxu0 0.0
    %568 = vmatpush.msra.mxu0 0.0
    %569 = vmatpush.msra.mxu0 0.0
    %570 = vmatpush.msra.mxu0 %v28
    %571 = vmatpush.msra.mxu0 %v27
    %572 = vmatpush.msra.mxu0 %v26
    %573 = vmatpush.msra.mxu0 %v25
    %574 = vmatmul.f32.gmra.mxu0 %v556
    %v575 = vpop.f32.mrf.mxu0
    %v576 = vadd.f32 %v209, %v575
    %577 = vdwg.mxu0
    %v578 = vxor.u32 %v576, 2147483648
    %v579 = vmul.f32 %v578, 1.442695
    %v580 = vpow.pop %v579
    %v581 = vadd.f32 %v580, 1.0
    %v582 = vrcp.pop %v581
    %v583 = vmul.f32 %v581, %v582
    %v584 = vsub.f32 1.0, %v583
    %v585 = vmul.f32 %v582, %v584
    %v586 = vadd.f32 %v582, %v585
    %vm587 = vweird.f32 %v581
    %vm588 = vweird.f32 %v582
    %vm589 = vmor %vm587, %vm588
    %v590 = vsel %vm589, %v582, %v586
    %v591 = vand.u32 2147483647, %v581
    %vm592 = vcmp.eq.f32.partialorder %v591, 8.507059e+37
    %v593 = vand.u32 %v581, 2147483648
    %v594 = vor.u32 1.1754944e-38, %v593
    %v595 = vsel %vm592, %v594, %v590
    %v596 = vmul.f32 1.0, %v595
    %v597 = vtanh.pop %v576
    %v598 = vmul.f32 %v596, %v546
    %600 = vrot.lane.b32.xlu0 %v597, 96
    %v601 = vpop.permute.xlu0 %600
    %v603 = vmul.f32 %v596, %v601
    %605 = vrot.lane.b32.xlu0 %v603, 96
    %v606 = vpop.permute.xlu0 %605
    %v608 = vadd.f32 %v598, %v606
    %v609 = vtanh.pop %v608
    %611 = vrot.lane.b32.xlu0 %v609, 96
    %v612 = vpop.permute.xlu0 %611
    %v614 = vmul.f32 %v596, %v612
    %616 = vrot.lane.b32.xlu0 %v614, 32
    %v617 = vpop.permute.xlu0 %616
    %v618 = vsel %vm307, %v617, 0
    %620 = vmatpush.msra.mxu0 0.0
    %621 = vmatpush.msra.mxu0 0.0
    %622 = vmatpush.msra.mxu0 0.0
    %623 = vmatpush.msra.mxu0 0.0
    %624 = vmatpush.msra.mxu0 0.0
    %625 = vmatpush.msra.mxu0 0.0
    %626 = vmatpush.msra.mxu0 0.0
    %627 = vmatpush.msra.mxu0 0.0
    %628 = vmatpush.msra.mxu0 0.0
    %629 = vmatpush.msra.mxu0 0.0
    %630 = vmatpush.msra.mxu0 0.0
    %631 = vmatpush.msra.mxu0 0.0
    %632 = vmatpush.msra.mxu0 %v28
    %633 = vmatpush.msra.mxu0 %v27
    %634 = vmatpush.msra.mxu0 %v26
    %635 = vmatpush.msra.mxu0 %v25
    %636 = vmatmul.f32.gmra.mxu0 %v618
    %v637 = vpop.f32.mrf.mxu0
    %v638 = vadd.f32 %v237, %v637
    %639 = vdwg.mxu0
    %v640 = vxor.u32 %v638, 2147483648
    %v641 = vmul.f32 %v640, 1.442695
    %v642 = vpow.pop %v641
    %v643 = vadd.f32 %v642, 1.0
    %v644 = vrcp.pop %v643
    %v645 = vmul.f32 %v643, %v644
    %v646 = vsub.f32 1.0, %v645
    %v647 = vmul.f32 %v644, %v646
    %v648 = vadd.f32 %v644, %v647
    %vm649 = vweird.f32 %v643
    %vm650 = vweird.f32 %v644
    %vm651 = vmor %vm649, %vm650
    %v652 = vsel %vm651, %v644, %v648
    %v653 = vand.u32 2147483647, %v643
    %vm654 = vcmp.eq.f32.partialorder %v653, 8.507059e+37
    %v655 = vand.u32 %v643, 2147483648
    %v656 = vor.u32 1.1754944e-38, %v655
    %v657 = vsel %vm654, %v656, %v652
    %v658 = vmul.f32 1.0, %v657
    %v659 = vtanh.pop %v638
    %v660 = vmul.f32 %v658, %v608
    %662 = vrot.lane.b32.xlu0 %v659, 96
    %v663 = vpop.permute.xlu0 %662
    %v665 = vmul.f32 %v658, %v663
    %667 = vrot.lane.b32.xlu0 %v665, 96
    %v668 = vpop.permute.xlu0 %667
    %v670 = vadd.f32 %v660, %v668
    %v671 = vtanh.pop %v670
    %673 = vrot.lane.b32.xlu0 %v671, 96
    %v674 = vpop.permute.xlu0 %673
    %v676 = vmul.f32 %v658, %v674
    %678 = vrot.lane.b32.xlu0 %v676, 32
    %v679 = vpop.permute.xlu0 %678
    %v680 = vsel %vm307, %v679, 0
    %682 = vmatpush.msra.mxu0 0.0
    %683 = vmatpush.msra.mxu0 0.0
    %684 = vmatpush.msra.mxu0 0.0
    %685 = vmatpush.msra.mxu0 0.0
    %686 = vmatpush.msra.mxu0 0.0
    %687 = vmatpush.msra.mxu0 0.0
    %688 = vmatpush.msra.mxu0 0.0
    %689 = vmatpush.msra.mxu0 0.0
    %690 = vmatpush.msra.mxu0 0.0
    %691 = vmatpush.msra.mxu0 0.0
    %692 = vmatpush.msra.mxu0 0.0
    %693 = vmatpush.msra.mxu0 0.0
    %694 = vmatpush.msra.mxu0 %v28
    %695 = vmatpush.msra.mxu0 %v27
    %696 = vmatpush.msra.mxu0 %v26
    %697 = vmatpush.msra.mxu0 %v25
    %698 = vmatmul.f32.gmra.mxu0 %v680
    %v699 = vpop.f32.mrf.mxu0
    %v700 = vadd.f32 %v265, %v699
    %701 = vdwg.mxu0
    %v702 = vxor.u32 %v700, 2147483648
    %v703 = vmul.f32 %v702, 1.442695
    %v704 = vpow.pop %v703
    %v705 = vadd.f32 %v704, 1.0
    %v706 = vrcp.pop %v705
    %v707 = vmul.f32 %v705, %v706
    %v708 = vsub.f32 1.0, %v707
    %v709 = vmul.f32 %v706, %v708
    %v710 = vadd.f32 %v706, %v709
    %vm711 = vweird.f32 %v705
    %vm712 = vweird.f32 %v706
    %vm713 = vmor %vm711, %vm712
    %v714 = vsel %vm713, %v706, %v710
    %v715 = vand.u32 2147483647, %v705
    %vm716 = vcmp.eq.f32.partialorder %v715, 8.507059e+37
    %v717 = vand.u32 %v705, 2147483648
    %v718 = vor.u32 1.1754944e-38, %v717
    %v719 = vsel %vm716, %v718, %v714
    %v720 = vmul.f32 1.0, %v719
    %v721 = vtanh.pop %v700
    %v722 = vmul.f32 %v720, %v670
    %724 = vrot.lane.b32.xlu0 %v721, 96
    %v725 = vpop.permute.xlu0 %724
    %v727 = vmul.f32 %v720, %v725
    %729 = vrot.lane.b32.xlu0 %v727, 96
    %v730 = vpop.permute.xlu0 %729
    %v732 = vadd.f32 %v722, %v730
    %v733 = vtanh.pop %v732
    %735 = vrot.lane.b32.xlu0 %v733, 96
    %v736 = vpop.permute.xlu0 %735
    %v738 = vmul.f32 %v720, %v736
    %v739 = vld [vmem:[%s5] sm:$0x1]
    %v741 = vperm.slane %v739, 0
    %744 = vrot.lane.b32.xlu0 %v738, 32
    %v745 = vpop.permute.xlu0 %744
    %v746 = vsel %vm307, %v745, 0
    %748 = vmatpush.msra.mxu0 0.0
    %749 = vmatpush.msra.mxu0 0.0
    %750 = vmatpush.msra.mxu0 0.0
    %751 = vmatpush.msra.mxu0 0.0
    %752 = vmatpush.msra.mxu0 0.0
    %753 = vmatpush.msra.mxu0 0.0
    %754 = vmatpush.msra.mxu0 0.0
    %755 = vmatpush.msra.mxu0 0.0
    %756 = vmatpush.msra.mxu0 0.0
    %757 = vmatpush.msra.mxu0 0.0
    %758 = vmatpush.msra.mxu0 0.0
    %759 = vmatpush.msra.mxu0 0.0
    %760 = vmatpush.msra.mxu0 %v32
    %761 = vmatpush.msra.mxu0 %v31
    %762 = vmatpush.msra.mxu0 %v30
    %763 = vmatpush.msra.mxu0 %v29
    %764 = vmatmul.f32.gmra.mxu0 %v746
    %v765 = vpop.f32.mrf.mxu0
    %v766 = vadd.f32 %v741, %v765
    %767 = vdwg.mxu0
    %vm768 = vcmask 9216
    %769 = vst.msk [vmem:[#allocation2] sm:$0x3] %vm768, %v766
    // Predicated region
    $region26: #{tpu_custom_call.1} parent=1 // pred_check
      _
    $region27: #{tpu_custom_call.1} parent=1 // pred_check_branch
      %771 = sbr.rel (0) target = $region29
    $region28: #{tpu_custom_call.1} parent=1 // pred_region
      %773 = vsyncadd [#allocation3], 0
      %s775 = sshll.u32 [#allocation2], 4
      %s776 = int_to_ptr.vmem [resolvable:$true] %s775
      %s777 = sshll.u32 %s6, 4
      %s778 = int_to_ptr.hbm [resolvable:$true] %s777
      %780 = dma.vmem_to_hbm [thread:$0]  %s776, 32, %s778, [#allocation3]
    $region29: #{tpu_custom_call.1} parent=1 // pred_fallthru
      _
    // Predicated region
    $region30: #{tpu_custom_call.1} parent=1 // pred_check
      _
    $region31: #{tpu_custom_call.1} parent=1 // pred_check_branch
      %782 = sbr.rel (0) target = $region33
    $region32: #{tpu_custom_call.1} parent=1 // pred_region
      %784 = dma.done [#allocation3], 32
    $region33: #{tpu_custom_call.1} parent=1 // pred_fallthru
      _
    %785 = vsyncpa [#allocation3], 1

</llo_original>
